<compile_context>
chip_gen: v5e
topology: v5e:2x2
jax: 0.10.0
libtpu: 0.0.40
codegen_flags: <defaults>
</compile_context>

<pallas_src>
import math
from functools import partial

import jax
import jax.numpy as jnp
from jax import lax
from jax.experimental import pallas as pl
from jax.experimental.pallas import tpu as pltpu


def _round_up(x, m):
    return ((x + m - 1) // m) * m


def _equal_linear_kernel(x_ref, w_ref, *rest, scale, bias_scale, has_bias,
                         activation, negative_slope):
    # refs: x (tm, tk), w (tn, tk), [b (1, tn)], out (tm, tn), acc (tm, tn) f32 scratch
    if has_bias:
        b_ref, o_ref, acc_ref = rest
    else:
        o_ref, acc_ref = rest

    k = pl.program_id(2)

    @pl.when(k == 0)
    def _():
        acc_ref[...] = jnp.zeros_like(acc_ref)

    # NT matmul on the MXU: contract x's dim 1 with w's dim 1 -> (tm, tn), f32 accumulate.
    acc_ref[...] += lax.dot_general(
        x_ref[...], w_ref[...],
        dimension_numbers=(((1,), (1,)), ((), ())),
        preferred_element_type=jnp.float32,
    )

    @pl.when(k == pl.num_programs(2) - 1)
    def _():
        # Epilogue runs exactly once per output tile, on the f32 accumulator.
        out = acc_ref[...] * jnp.float32(scale)
        if has_bias:
            out = out + b_ref[...] * jnp.float32(bias_scale)
        if activation is not None:
            # fused_leaky_relu: sqrt(2) already folded into scale/bias_scale.
            out = jnp.where(out >= 0.0, out, jnp.float32(negative_slope) * out)
        o_ref[...] = out.astype(o_ref.dtype)


def equal_linear_forward(x, weight, bias=None, *, lr_mul=1.0, activation=None,
                         compute_dtype=None):
    """EqualLinear forward.

    x:      (B, in_dim)
    weight: (out_dim, in_dim)   (PyTorch layout, NOT transposed)
    bias:   (out_dim,) or None
    compute_dtype: optionally cast x/weight (e.g. jnp.bfloat16) to halve HBM traffic;
                   accumulation stays f32 and scale is applied post-matmul.
    """
    B, in_dim = x.shape
    out_dim, w_in = weight.shape
    assert w_in == in_dim
    out_dtype = x.dtype

    # Equalized-LR scale, with sqrt(2) folded in for the fused_leaky_relu path.
    scale = 1.0 / math.sqrt(in_dim) * lr_mul
    bias_scale = float(lr_mul)
    if activation is not None:
        sqrt2 = math.sqrt(2.0)
        scale *= sqrt2
        bias_scale *= sqrt2

    has_bias = bias is not None

    if compute_dtype is not None:
        x = x.astype(compute_dtype)
        weight = weight.astype(compute_dtype)

    # ---- Tile selection (lane-dense output, sublane-aligned batch). ----
    sub = 16 if x.dtype == jnp.bfloat16 else 8          # sublane granularity
    M_pad = _round_up(B, sub)
    tm = min(M_pad, 256)
    M_pad = _round_up(M_pad, tm)

    N_pad = _round_up(out_dim, 128)                      # lane-dense output
    tn = min(N_pad, 512)
    N_pad = _round_up(N_pad, tn)

    if in_dim <= 1024:                                   # no K tiling needed
        tk, K_pad = in_dim, in_dim
    else:
        tk = 512
        K_pad = _round_up(in_dim, tk)

    # ---- Zero padding (no-op when already aligned). Zeros in K contribute nothing. ----
    if (M_pad, K_pad) != (B, in_dim):
        x = jnp.pad(x, ((0, M_pad - B), (0, K_pad - in_dim)))
    if (N_pad, K_pad) != (out_dim, in_dim):
        weight = jnp.pad(weight, ((0, N_pad - out_dim), (0, K_pad - in_dim)))

    inputs = [x, weight]
    in_specs = [
        pl.BlockSpec((tm, tk), lambda i, j, k: (i, k)),   # x tile
        pl.BlockSpec((tn, tk), lambda i, j, k: (j, k)),   # weight tile (out, in) layout
    ]
    if has_bias:
        b2 = bias.astype(jnp.float32).reshape(1, out_dim)
        if N_pad != out_dim:
            b2 = jnp.pad(b2, ((0, 0), (0, N_pad - out_dim)))
        inputs.append(b2)
        in_specs.append(pl.BlockSpec((1, tn), lambda i, j, k: (0, j)))

    kernel = partial(
        _equal_linear_kernel,
        scale=float(scale),
        bias_scale=bias_scale,
        has_bias=has_bias,
        activation=activation,
        negative_slope=0.2,
    )

    out_padded = pl.pallas_call(
        kernel,
        out_shape=jax.ShapeDtypeStruct((M_pad, N_pad), out_dtype),
        grid=(M_pad // tm, N_pad // tn, K_pad // tk),
        in_specs=in_specs,
        out_specs=pl.BlockSpec((tm, tn), lambda i, j, k: (i, j)),
        scratch_shapes=[pltpu.VMEM((tm, tn), jnp.float32)],
        compiler_params=pltpu.CompilerParams(
            dimension_semantics=("parallel", "parallel", "arbitrary"),
        ),
    )(*inputs)

    if (M_pad, N_pad) != (B, out_dim):
        out_padded = out_padded[:B, :out_dim]
    return out_padded


def init_equal_linear_params(key, in_dim, out_dim, bias=True, bias_init=0.0, lr_mul=1.0):
    # Matches nn.Parameter(torch.randn(out_dim, in_dim).div_(lr_mul)) and
    # torch.zeros(out_dim).fill_(bias_init), with JAX's deterministic PRNG.
    wkey, _ = jax.random.split(key)
    weight = jax.random.normal(wkey, (out_dim, in_dim), dtype=jnp.float32) / lr_mul
    b = jnp.full((out_dim,), bias_init, dtype=jnp.float32) if bias else None
    return weight, b


def _reference(x, weight, bias, *, lr_mul=1.0, activation=None):
    scale = 1.0 / math.sqrt(weight.shape[1]) * lr_mul
    out = jnp.dot(x, (weight * scale).T, precision=lax.Precision.HIGHEST)
    if activation is not None:
        out = out + bias * lr_mul
        out = jnp.where(out >= 0, out, 0.2 * out) * math.sqrt(2.0)
    elif bias is not None:
        out = out + bias * lr_mul
    return out


if __name__ == "__main__":
    key = jax.random.PRNGKey(0)
    kx1, kp1, kx2, kp2 = jax.random.split(key, 4)

    # --- Case 1: small shapes (B=8, in=32, out=64), both activation paths + no-bias ---
    B, in_dim, out_dim = 8, 32, 64
    lr_mul = 0.5
    x = jax.random.normal(kx1, (B, in_dim), dtype=jnp.float32)
    weight, bias = init_equal_linear_params(
        kp1, in_dim, out_dim, bias=True, bias_init=0.1, lr_mul=lr_mul)

    out_lin = jax.block_until_ready(
        equal_linear_forward(x, weight, bias, lr_mul=lr_mul, activation=None))
    out_act = jax.block_until_ready(
        equal_linear_forward(x, weight, bias, lr_mul=lr_mul, activation="fused_lrelu"))
    out_nb = jax.block_until_ready(
        equal_linear_forward(x, weight, None, lr_mul=lr_mul, activation=None))

    ref_lin = _reference(x, weight, bias, lr_mul=lr_mul, activation=None)
    ref_act = _reference(x, weight, bias, lr_mul=lr_mul, activation="fused_lrelu")
    ref_nb = _reference(x, weight, None, lr_mul=lr_mul, activation=None)

    assert out_lin.shape == (B, out_dim) and out_act.shape == (B, out_dim)
    assert jnp.allclose(out_lin, ref_lin, atol=1e-4, rtol=1e-4)
    assert jnp.allclose(out_act, ref_act, atol=1e-4, rtol=1e-4)
    assert jnp.allclose(out_nb, ref_nb, atol=1e-4, rtol=1e-4)

    # --- Case 2: K-tiled accumulator path (in_dim > 1024 -> 3 K-steps) + padded N ---
    B2, in_dim2, out_dim2 = 16, 1536, 192
    x2 = jax.random.normal(kx2, (B2, in_dim2), dtype=jnp.float32)
    w2, b2 = init_equal_linear_params(kp2, in_dim2, out_dim2, bias=True,
                                      bias_init=0.0, lr_mul=1.0)
    out2 = jax.block_until_ready(
        equal_linear_forward(x2, w2, b2, lr_mul=1.0, activation="fused_lrelu"))
    ref2 = _reference(x2, w2, b2, lr_mul=1.0, activation="fused_lrelu")
    assert out2.shape == (B2, out_dim2)
    assert jnp.allclose(out2, ref2, atol=1e-4, rtol=1e-4)

    print("KERNEL_OK")
</pallas_src>

<mosaic_0001>
module attributes {stable_mosaic.version = 11 : i64} {
  func.func @_equal_linear_kernel(%arg0: i32, %arg1: i32, %arg2: i32, %arg3: memref<8x32xf32, #tpu.memory_space<vmem>>, %arg4: memref<128x32xf32, #tpu.memory_space<vmem>>, %arg5: memref<1x128xf32, #tpu.memory_space<vmem>>, %arg6: memref<8x128xf32, #tpu.memory_space<vmem>>, %arg7: memref<8x128xf32, #tpu.memory_space<vmem>>) attributes {dimension_semantics = [#tpu.dimension_semantics<parallel>, #tpu.dimension_semantics<parallel>, #tpu.dimension_semantics<arbitrary>], iteration_bounds = array<i64: 1, 1, 1>, scalar_prefetch = 0 : i64, scratch_operands = 1 : i64, tpu.core_type = #tpu.core_type<tc>, window_params = [{transform_indices = @transform_0, window_bounds = array<i64: 8, 32>}, {transform_indices = @transform_1, window_bounds = array<i64: 128, 32>}, {transform_indices = @transform_2, window_bounds = array<i64: 1, 128>}, {transform_indices = @transform_3, window_bounds = array<i64: 8, 128>}]} {
    %c0_i32 = arith.constant 0 : i32
    %0 = arith.cmpi eq, %arg2, %c0_i32 : i32
    %1 = arith.extui %0 : i1 to i32
    %c0_i32_0 = arith.constant 0 : i32
    %2 = arith.cmpi ne, %1, %c0_i32_0 : i32
    scf.if %2 {
      %cst_10 = arith.constant 0.000000e+00 : f32
      %12 = vector.broadcast %cst_10 : f32 to vector<8x128xf32>
      %c0_11 = arith.constant 0 : index
      %c0_12 = arith.constant 0 : index
      %13 = vector.load %arg7[%c0_11, %c0_12] : memref<8x128xf32, #tpu.memory_space<vmem>>, vector<8x128xf32>
      tpu.vector_store %arg7[%c0_11, %c0_12], %12 {strides = array<i32>} : memref<8x128xf32, #tpu.memory_space<vmem>>, vector<8x128xf32>,
    } else {
    }
    %c0 = arith.constant 0 : index
    %c0_1 = arith.constant 0 : index
    %3 = vector.load %arg7[%c0, %c0_1] : memref<8x128xf32, #tpu.memory_space<vmem>>, vector<8x128xf32>
    %c0_2 = arith.constant 0 : index
    %c0_3 = arith.constant 0 : index
    %4 = vector.load %arg3[%c0_2, %c0_3] : memref<8x32xf32, #tpu.memory_space<vmem>>, vector<8x32xf32>
    %c0_4 = arith.constant 0 : index
    %c0_5 = arith.constant 0 : index
    %5 = vector.load %arg4[%c0_4, %c0_5] : memref<128x32xf32, #tpu.memory_space<vmem>>, vector<128x32xf32>
    %cst = arith.constant dense<0.000000e+00> : vector<8x128xf32>
    %6 = tpu.matmul %4, %5, %cst {dimension_numbers = #tpu.dot_dimension_numbers<[1], [1], [0], [0], [0, 0, 1, 0], [], []>} : vector<8x32xf32>, vector<128x32xf32>, vector<8x128xf32> -> vector<8x128xf32>
    %7 = arith.addf %3, %6 : vector<8x128xf32>
    %c0_6 = arith.constant 0 : index
    %c0_7 = arith.constant 0 : index
    %8 = vector.load %arg7[%c0_6, %c0_7] : memref<8x128xf32, #tpu.memory_space<vmem>>, vector<8x128xf32>
    tpu.vector_store %arg7[%c0_6, %c0_7], %7 {strides = array<i32>} : memref<8x128xf32, #tpu.memory_space<vmem>>, vector<8x128xf32>,
    %c0_i32_8 = arith.constant 0 : i32
    %9 = arith.cmpi eq, %arg2, %c0_i32_8 : i32
    %10 = arith.extui %9 : i1 to i32
    %c0_i32_9 = arith.constant 0 : i32
    %11 = arith.cmpi ne, %10, %c0_i32_9 : i32
    scf.if %11 {
      %c0_10 = arith.constant 0 : index
      %c0_11 = arith.constant 0 : index
      %12 = vector.load %arg7[%c0_10, %c0_11] : memref<8x128xf32, #tpu.memory_space<vmem>>, vector<8x128xf32>
      %cst_12 = arith.constant 0.0883883461 : f32
      %13 = vector.broadcast %cst_12 : f32 to vector<8x128xf32>
      %14 = arith.mulf %12, %13 : vector<8x128xf32>
      %c0_13 = arith.constant 0 : index
      %c0_14 = arith.constant 0 : index
      %15 = vector.load %arg5[%c0_13, %c0_14] : memref<1x128xf32, #tpu.memory_space<vmem>>, vector<1x128xf32>
      %cst_15 = arith.constant 5.000000e-01 : f32
      %16 = vector.broadcast %cst_15 : f32 to vector<1x128xf32>
      %17 = arith.mulf %15, %16 : vector<1x128xf32>
      %18 = vector.broadcast %17 : vector<1x128xf32> to vector<8x128xf32>
      %19 = arith.addf %14, %18 : vector<8x128xf32>
      %c0_16 = arith.constant 0 : index
      %c0_17 = arith.constant 0 : index
      %20 = vector.load %arg6[%c0_16, %c0_17] : memref<8x128xf32, #tpu.memory_space<vmem>>, vector<8x128xf32>
      tpu.vector_store %arg6[%c0_16, %c0_17], %19 {strides = array<i32>} : memref<8x128xf32, #tpu.memory_space<vmem>>, vector<8x128xf32>,
    } else {
    }
    return
  }
  func.func @transform_0(%arg0: i32, %arg1: i32, %arg2: i32) -> (i32, i32) {
    %c0_i32 = arith.constant 0 : i32
    return %arg0, %arg2 : i32, i32
  }
  func.func @transform_1(%arg0: i32, %arg1: i32, %arg2: i32) -> (i32, i32) {
    %c0_i32 = arith.constant 0 : i32
    return %arg1, %arg2 : i32, i32
  }
  func.func @transform_2(%arg0: i32, %arg1: i32, %arg2: i32) -> (i32, i32) {
    %c0_i32 = arith.constant 0 : i32
    %c0_i32_0 = arith.constant 0 : i32
    return %c0_i32, %arg1 : i32, i32
  }
  func.func @transform_3(%arg0: i32, %arg1: i32, %arg2: i32) -> (i32, i32) {
    %c0_i32 = arith.constant 0 : i32
    return %arg0, %arg1 : i32, i32
  }
}

</mosaic_0001>

<llo_original>
// kernel: tpu_custom_call.1
$region0: #{tpu_custom_call.1}
  #allocation0 [shape = 'u32[]', space=smem, size = 0x4, offset = 0x4, fixed_abs, tag = 'smem constant byte address 0x4 - core index']
  #allocation1 [shape = 'u32[72,128]{1,0:T(1,128)}', space=vmem, size = 0x9000, scoped, tag = 'internal scratch']
  #allocation2 [shape = 'f32[8,128]{1,0:T(8,128)}', space=vmem, size = 0x1000, scoped, tag = 'scratch operand']
  %s0 = inlined_call_operand.vmem [shape: f32[8,32], index: 0, kind: input, shape index: {}]
  %s1 = inlined_call_operand.vmem [shape: f32[128,32], index: 1, kind: input, shape index: {}]
  %s2 = inlined_call_operand.vmem [shape: f32[1,128], index: 2, kind: input, shape index: {}]
  %s3 = inlined_call_operand.hbm [shape: f32[8,128], index: 3, kind: output, shape index: {}]
  %s4 = sld [smem:[#allocation0]]
  $region30: #{tpu_custom_call.1} parent=0
    _
  %s6 = ssub.s32 1, %s4
  %s7 = scalar_select 0, %s6, %s4
  $region1: #{tpu_custom_call.1} parent=0
    #allocation3 [shape = 'u8[4096]{0}', space=vmem, size = 0x1000, scoped, tag = 'output window, operand 0, single buffered']
    #allocation4 [shape = 's32[1]{0}', space=sflag, size = 0x4, scoped, tag = 'scoped memory for tpu_custom_call.1']
    %8 = vsyncpa [#allocation4], 0
    // Predicated region
    $region2: #{tpu_custom_call.1} parent=1 // pred_check
      _
    $region3: #{tpu_custom_call.1} parent=1 // pred_check_branch
      %10 = sbr.rel (0) target = $region5
    $region4: #{tpu_custom_call.1} parent=1 // pred_region
      _
    $region5: #{tpu_custom_call.1} parent=1 // pred_fallthru
      _
    // Predicated region
    $region6: #{tpu_custom_call.1} parent=1 // pred_check
      _
    $region7: #{tpu_custom_call.1} parent=1 // pred_check_branch
      %12 = sbr.rel (0) target = $region9
    $region8: #{tpu_custom_call.1} parent=1 // pred_region
      _
    $region9: #{tpu_custom_call.1} parent=1 // pred_fallthru
      _
    // Predicated region
    $region10: #{tpu_custom_call.1} parent=1 // pred_check
      _
    $region11: #{tpu_custom_call.1} parent=1 // pred_check_branch
      %14 = sbr.rel (0) target = $region13
    $region12: #{tpu_custom_call.1} parent=1 // pred_region
      _
    $region13: #{tpu_custom_call.1} parent=1 // pred_fallthru
      _
    %p15 = scmp.eq.s32.totalorder 0, 0
    // Predicated region
    $region14: #{tpu_custom_call.1} parent=1 // pred_check
      %p16 = pneg %p15
    $region15: #{tpu_custom_call.1} parent=1 // pred_check_branch
      %18 = sbr.rel (%p16) target = $region17
    $region16: #{tpu_custom_call.1} parent=1 // pred_region
      %19 = vst [vmem:[#allocation2] sm:$0xff] 0.0
    $region17: #{tpu_custom_call.1} parent=1 // pred_fallthru
      _
    %v20 = vld [vmem:[#allocation2] sm:$0xff]
    %v21 = vld [vmem:[%s0] sm:$0xff]
    %v22 = vld [vmem:[%s1] sm:$0xff]
    %v23 = vld [vmem:[%s1 + $0x8] sm:$0xff]
    %v24 = vld [vmem:[%s1 + $0x10] sm:$0xff]
    %v25 = vld [vmem:[%s1 + $0x18] sm:$0xff]
    %v26 = vld [vmem:[%s1 + $0x20] sm:$0xff]
    %v27 = vld [vmem:[%s1 + $0x28] sm:$0xff]
    %v28 = vld [vmem:[%s1 + $0x30] sm:$0xff]
    %v29 = vld [vmem:[%s1 + $0x38] sm:$0xff]
    %v30 = vld [vmem:[%s1 + $0x40] sm:$0xff]
    %v31 = vld [vmem:[%s1 + $0x48] sm:$0xff]
    %v32 = vld [vmem:[%s1 + $0x50] sm:$0xff]
    %v33 = vld [vmem:[%s1 + $0x58] sm:$0xff]
    %v34 = vld [vmem:[%s1 + $0x60] sm:$0xff]
    %v35 = vld [vmem:[%s1 + $0x68] sm:$0xff]
    %v36 = vld [vmem:[%s1 + $0x70] sm:$0xff]
    %v37 = vld [vmem:[%s1 + $0x78] sm:$0xff]
    %vm38 = vcmask 261120
    %v40 = vsel %vm38, %v21, 0
    %v43 = vsel %vm38, %v22, 0
    %v46 = vsel %vm38, %v23, 0
    %v49 = vsel %vm38, %v24, 0
    %v52 = vsel %vm38, %v25, 0
    %v55 = vsel %vm38, %v26, 0
    %v58 = vsel %vm38, %v27, 0
    %v61 = vsel %vm38, %v28, 0
    %v64 = vsel %vm38, %v29, 0
    %v67 = vsel %vm38, %v30, 0
    %v70 = vsel %vm38, %v31, 0
    %v73 = vsel %vm38, %v32, 0
    %v76 = vsel %vm38, %v33, 0
    %v79 = vsel %vm38, %v34, 0
    %v82 = vsel %vm38, %v35, 0
    %v85 = vsel %vm38, %v36, 0
    %v88 = vsel %vm38, %v37, 0
    %90 = vmatpush.xpose.msra.mxu0 %v88
    %91 = vmatpush.xpose.msra.mxu0 %v85
    %92 = vmatpush.xpose.msra.mxu0 %v82
    %93 = vmatpush.xpose.msra.mxu0 %v79
    %94 = vmatpush.xpose.msra.mxu0 %v76
    %95 = vmatpush.xpose.msra.mxu0 %v73
    %96 = vmatpush.xpose.msra.mxu0 %v70
    %97 = vmatpush.xpose.msra.mxu0 %v67
    %98 = vmatpush.xpose.msra.mxu0 %v64
    %99 = vmatpush.xpose.msra.mxu0 %v61
    %100 = vmatpush.xpose.msra.mxu0 %v58
    %101 = vmatpush.xpose.msra.mxu0 %v55
    %102 = vmatpush.xpose.msra.mxu0 %v52
    %103 = vmatpush.xpose.msra.mxu0 %v49
    %104 = vmatpush.xpose.msra.mxu0 %v46
    %105 = vmatpush.xpose.msra.mxu0 %v43
    %106 = vmatmul.f32.gmra.mxu0 %v40
    %v107 = vpop.f32.mrf.mxu0
    %v108 = vadd.f32 0.0, %v107
    %109 = vdwg.mxu0
    %v110 = vadd.f32 %v20, %v108
    %111 = vst [vmem:[#allocation2] sm:$0xff] %v110
    // Predicated region
    $region18: #{tpu_custom_call.1} parent=1 // pred_check
      %p112 = pneg %p15
    $region19: #{tpu_custom_call.1} parent=1 // pred_check_branch
      %114 = sbr.rel (%p112) target = $region21
    $region20: #{tpu_custom_call.1} parent=1 // pred_region
      %v115 = vld [vmem:[#allocation2] sm:$0xff]
      %v116 = vmul.f32 %v115, 0.088388346
      %v117 = vld [vmem:[%s2] sm:$0x1]
      %v118 = vmul.f32 %v117, 0.5
      %v120 = vperm.slane %v118, 0
      %v122 = vadd.f32 %v116, %v120
      %123 = vst [vmem:[#allocation3] sm:$0xff] %v122
    $region21: #{tpu_custom_call.1} parent=1 // pred_fallthru
      _
    // Predicated region
    $region22: #{tpu_custom_call.1} parent=1 // pred_check
      _
    $region23: #{tpu_custom_call.1} parent=1 // pred_check_branch
      %125 = sbr.rel (0) target = $region25
    $region24: #{tpu_custom_call.1} parent=1 // pred_region
      %127 = vsyncadd [#allocation4], 0
      %s129 = sshll.u32 [#allocation3], 4
      %s130 = int_to_ptr.vmem [resolvable:$true] %s129
      %s131 = sshll.u32 %s3, 4
      %s132 = int_to_ptr.hbm [resolvable:$true] %s131
      %134 = dma.vmem_to_hbm [thread:$0]  %s130, 128, %s132, [#allocation4]
    $region25: #{tpu_custom_call.1} parent=1 // pred_fallthru
      _
    // Predicated region
    $region26: #{tpu_custom_call.1} parent=1 // pred_check
      _
    $region27: #{tpu_custom_call.1} parent=1 // pred_check_branch
      %136 = sbr.rel (0) target = $region29
    $region28: #{tpu_custom_call.1} parent=1 // pred_region
      %138 = dma.done [#allocation4], 128
    $region29: #{tpu_custom_call.1} parent=1 // pred_fallthru
      _
    %139 = vsyncpa [#allocation4], 1

</llo_original>
